<compile_context>
chip_gen: v6e
topology: v6e:2x2x1
jax: 0.10.0
libtpu: 0.0.40
codegen_flags: <defaults>
</compile_context>

<pallas_src>
import functools

import jax
import jax.numpy as jnp
from jax.experimental import pallas as pl
from jax.experimental.pallas import tpu as pltpu

# Tokenizer special-token ids (RoBERTa-style convention used by XPhoneBERT).
CLS_ID = 0
PAD_ID = 1
SEP_ID = 2
LN_EPS = 1e-5  # torch.nn.LayerNorm default


def _round_up(x, m):
    return (x + m - 1) // m * m


def _layernorm_f32(x, w, b, eps):
    """Two-pass LayerNorm in float32 (robust to cancellation)."""
    mu = jnp.mean(x, axis=-1, keepdims=True)
    xc = x - mu
    var = jnp.mean(xc * xc, axis=-1, keepdims=True)
    return xc * jax.lax.rsqrt(var + eps) * w + b


def _seq_kernel(x_ref, keep_ref, nw_ref, nb_ref, w_ref, b_ref, o_ref, *, eps):
    """Sequence branch: LayerNorm -> Linear -> masked_fill, one row tile.

    x_ref   : (TN, H)  f32 token hidden states (one tile of rows)
    keep_ref: (TN, 1)  f32  1.0 = keep, 0.0 = masked (pad / CLS / SEP)
    nw/nb   : (1, H)   f32 LayerNorm affine        (resident)
    w_ref   : (H, Ds)  bf16 pre-transposed weight  (resident)
    b_ref   : (1, Ds)  f32 bias                    (resident)
    o_ref   : (TN, Ds) f32
    """
    x = x_ref[...].astype(jnp.float32)
    xn = _layernorm_f32(x, nw_ref[...], nb_ref[...], eps)
    # bf16 operands, f32 accumulate on the MXU.
    out = jnp.dot(xn.astype(jnp.bfloat16), w_ref[...],
                  preferred_element_type=jnp.float32)
    # masked_fill(key_mask.unsqueeze(-1), 0.0) as a broadcast multiply.
    out = (out + b_ref[...]) * keep_ref[...]
    o_ref[...] = out.astype(o_ref.dtype)


def _global_kernel(cls_ref, nw_ref, nb_ref, w_ref, b_ref, o_ref, *, eps):
    """Global branch on the B CLS rows: LayerNorm -> Linear."""
    x = cls_ref[...].astype(jnp.float32)
    xn = _layernorm_f32(x, nw_ref[...], nb_ref[...], eps)
    out = jnp.dot(xn.astype(jnp.bfloat16), w_ref[...],
                  preferred_element_type=jnp.float32)
    o_ref[...] = (out + b_ref[...]).astype(o_ref.dtype)


def text_encoder_head(hidden, input_ids, params, *, tile_rows=512):
    """
    hidden    : (B, T, H)  float32 -- backbone last_hidden_state
    input_ids : (B, T)     int32
    params    : dict (LayerNorm affine + Linear weights pre-transposed so the
                kernel computes x @ W + b)
    returns   : global_emb (B, Dg), seq_emb (B, T, Ds), key_mask (B, T) bool
    """
    B, T, H = hidden.shape
    Ds = params["ws"].shape[1]
    Dg = params["wg"].shape[1]
    N = B * T
    f32 = jnp.float32
    bf16 = jnp.bfloat16

    # Key mask: trivial elementwise work on (B, T) -> plain JAX; the kernel
    # receives a (N, 1) keep multiplier (no transpose, no mask output DMA).
    key_mask = ((input_ids == PAD_ID) | (input_ids == CLS_ID)
                | (input_ids == SEP_ID))
    keep = jnp.logical_not(key_mask).astype(f32).reshape(N, 1)

    # Flatten token rows (free reshape, no padding, no extra HBM copy).
    x = hidden.astype(f32).reshape(N, H)
    cls = hidden[:, 0, :].astype(f32)                     # (B, H)

    # Parameters: LN affine / bias in f32, matmul weights in bf16.
    snw = params["snw"].astype(f32)
    snb = params["snb"].astype(f32)
    gnw = params["gnw"].astype(f32)
    gnb = params["gnb"].astype(f32)
    ws = params["ws"].astype(bf16)                        # (H, Ds)
    bs = params["bs"].astype(f32)                         # (1, Ds)
    wg = params["wg"].astype(bf16)                        # (H, Dg)
    bg = params["bg"].astype(f32)                         # (1, Dg)

    # Row-tile size: multiple of 8 sublanes, capped so double-buffered tiles
    # (x + seq out) stay well inside the 16 MiB v5e scoped-VMEM default even
    # at production shapes (H=768 f32, TN=512 -> ~6 MiB of tile buffers).
    TN = min(tile_rows, _round_up(N, 8))
    grid = (pl.cdiv(N, TN),)

    resident = lambda shape: pl.BlockSpec(shape, lambda i: (0, 0))
    tiled = lambda shape: pl.BlockSpec(shape, lambda i: (i, 0))

    seq_cost = pl.CostEstimate(
        flops=2 * N * H * Ds + 8 * N * H,
        transcendentals=N,
        bytes_accessed=4 * N * H + 4 * N + 2 * H * Ds + 4 * Ds + 4 * N * Ds,
    )

    # ---- sequence branch: tiled over token rows, parallel for v7x megacore.
    seq_flat = pl.pallas_call(
        functools.partial(_seq_kernel, eps=LN_EPS),
        out_shape=jax.ShapeDtypeStruct((N, Ds), f32),
        grid_spec=pl.GridSpec(
            grid=grid,
            in_specs=[
                tiled((TN, H)),        # x
                tiled((TN, 1)),        # keep
                resident((1, H)),      # snw
                resident((1, H)),      # snb
                resident((H, Ds)),     # ws (bf16)
                resident((1, Ds)),     # bs
            ],
            out_specs=tiled((TN, Ds)),
        ),
        compiler_params=pltpu.CompilerParams(
            dimension_semantics=("parallel",)),
        cost_estimate=seq_cost,
    )(x, keep, snw, snb, ws, bs)

    # ---- global branch: tiny (B, H) @ (H, Dg) on CLS rows, single step.
    glob = pl.pallas_call(
        functools.partial(_global_kernel, eps=LN_EPS),
        out_shape=jax.ShapeDtypeStruct((B, Dg), f32),
        grid_spec=pl.GridSpec(
            grid=(1,),
            in_specs=[
                resident((B, H)),      # cls
                resident((1, H)),      # gnw
                resident((1, H)),      # gnb
                resident((H, Dg)),     # wg (bf16)
                resident((1, Dg)),     # bg
            ],
            out_specs=resident((B, Dg)),
        ),
        compiler_params=pltpu.CompilerParams(
            dimension_semantics=("arbitrary",)),
        cost_estimate=pl.CostEstimate(
            flops=2 * B * H * Dg + 8 * B * H,
            transcendentals=B,
            bytes_accessed=4 * B * H + 2 * H * Dg + 4 * Dg + 4 * B * Dg),
    )(cls, gnw, gnb, wg, bg)

    seq = seq_flat.reshape(B, T, Ds)
    return glob, seq, key_mask


def make_params(key, hsize, hidden_dim, seq_dim):
    """Deterministic parameter init matching the module's __init__."""
    k1, k2 = jax.random.split(key)

    def xavier_uniform(k, fan_out, fan_in):
        a = jnp.sqrt(6.0 / (fan_in + fan_out))
        return jax.random.uniform(k, (fan_out, fan_in),
                                  minval=-a, maxval=a, dtype=jnp.float32)

    wg = xavier_uniform(k1, hidden_dim, hsize)   # torch Linear weight (out, in)
    ws = xavier_uniform(k2, seq_dim, hsize)
    return {
        "gnw": jnp.ones((1, hsize), jnp.float32),     # LayerNorm weight = 1
        "gnb": jnp.zeros((1, hsize), jnp.float32),    # LayerNorm bias   = 0
        "snw": jnp.ones((1, hsize), jnp.float32),
        "snb": jnp.zeros((1, hsize), jnp.float32),
        "wg": wg.T,                                   # (H, Dg) for x @ W
        "bg": jnp.zeros((1, hidden_dim), jnp.float32),
        "ws": ws.T,                                   # (H, Ds)
        "bs": jnp.zeros((1, seq_dim), jnp.float32),
    }


def _reference(hidden, input_ids, params):
    """Plain-JAX float32 reference of the module math (sanity check)."""
    def ln(x, w, b):
        mu = jnp.mean(x, axis=-1, keepdims=True)
        var = jnp.mean((x - mu) ** 2, axis=-1, keepdims=True)
        return (x - mu) / jnp.sqrt(var + LN_EPS) * w[0] + b[0]

    cls = hidden[:, 0, :]
    glob = ln(cls, params["gnw"], params["gnb"]) @ params["wg"] + params["bg"][0]
    seq = ln(hidden, params["snw"], params["snb"]) @ params["ws"] + params["bs"][0]
    mask = ((input_ids == PAD_ID) | (input_ids == CLS_ID)
            | (input_ids == SEP_ID))
    seq = jnp.where(mask[..., None], 0.0, seq)
    return glob, seq, mask


if __name__ == "__main__":
    # TODO(synk): the XPhoneBERT backbone + tokenizer are an external
    # pretrained model; their outputs (hidden states, token ids) are
    # synthesized here.
    B, T, H = 2, 8, 32        # batch, seq-len, backbone hidden size
    HIDDEN_DIM, SEQ_DIM = 16, 16

    key = jax.random.PRNGKey(0)
    k_h, k_ids, k_p = jax.random.split(key, 3)

    hidden = jax.random.normal(k_h, (B, T, H), dtype=jnp.float32)
    input_ids = jax.random.randint(k_ids, (B, T), 4, 100, dtype=jnp.int32)
    # emulate tokenizer special tokens / padding
    input_ids = input_ids.at[:, 0].set(CLS_ID)
    input_ids = input_ids.at[0, T - 1].set(SEP_ID)
    input_ids = input_ids.at[1, T - 3].set(SEP_ID)
    input_ids = input_ids.at[1, T - 2:].set(PAD_ID)

    params = make_params(k_p, H, HIDDEN_DIM, SEQ_DIM)

    glob, seq, mask = text_encoder_head(hidden, input_ids, params)
    jax.block_until_ready((glob, seq, mask))

    # sanity check against plain-JAX float32 reference (kernel uses bf16
    # matmul operands with f32 accumulation -> slightly looser tolerance)
    g_ref, s_ref, m_ref = _reference(hidden, input_ids, params)
    assert glob.shape == (B, HIDDEN_DIM)
    assert seq.shape == (B, T, SEQ_DIM)
    assert mask.shape == (B, T) and mask.dtype == jnp.bool_
    assert jnp.allclose(glob, g_ref, rtol=2e-2, atol=2e-2)
    assert jnp.allclose(seq, s_ref, rtol=2e-2, atol=2e-2)
    assert bool(jnp.all(mask == m_ref))

    print("KERNEL_OK")
</pallas_src>

<mosaic_0001>
module attributes {stable_mosaic.version = 11 : i64} {
  func.func @_seq_kernel(%arg0: i32, %arg1: memref<16x32xf32, #tpu.memory_space<vmem>>, %arg2: memref<16x1xf32, #tpu.memory_space<vmem>>, %arg3: memref<1x32xf32, #tpu.memory_space<vmem>>, %arg4: memref<1x32xf32, #tpu.memory_space<vmem>>, %arg5: memref<32x16xbf16, #tpu.memory_space<vmem>>, %arg6: memref<1x16xf32, #tpu.memory_space<vmem>>, %arg7: memref<16x16xf32, #tpu.memory_space<vmem>>) attributes {dimension_semantics = [#tpu.dimension_semantics<parallel>], iteration_bounds = array<i64: 1>, scalar_prefetch = 0 : i64, scratch_operands = 0 : i64, tpu.core_type = #tpu.core_type<tc>, window_params = [{transform_indices = @transform_0, window_bounds = array<i64: 16, 32>}, {transform_indices = @transform_1, window_bounds = array<i64: 16, 1>}, {pipeline_mode = #tpu.pipeline_mode<synchronous>, transform_indices = @transform_2, window_bounds = array<i64: 1, 32>}, {pipeline_mode = #tpu.pipeline_mode<synchronous>, transform_indices = @transform_3, window_bounds = array<i64: 1, 32>}, {pipeline_mode = #tpu.pipeline_mode<synchronous>, transform_indices = @transform_4, window_bounds = array<i64: 32, 16>}, {pipeline_mode = #tpu.pipeline_mode<synchronous>, transform_indices = @transform_5, window_bounds = array<i64: 1, 16>}, {transform_indices = @transform_6, window_bounds = array<i64: 16, 16>}]} {
    %c0 = arith.constant 0 : index
    %c0_0 = arith.constant 0 : index
    %0 = vector.load %arg1[%c0, %c0_0] : memref<16x32xf32, #tpu.memory_space<vmem>>, vector<16x32xf32>
    %c0_1 = arith.constant 0 : index
    %c0_2 = arith.constant 0 : index
    %1 = vector.load %arg3[%c0_1, %c0_2] : memref<1x32xf32, #tpu.memory_space<vmem>>, vector<1x32xf32>
    %c0_3 = arith.constant 0 : index
    %c0_4 = arith.constant 0 : index
    %2 = vector.load %arg4[%c0_3, %c0_4] : memref<1x32xf32, #tpu.memory_space<vmem>>, vector<1x32xf32>
    %cst = arith.constant dense<0.000000e+00> : vector<16xf32>
    %3 = vector.multi_reduction <add>, %0, %cst [1] : vector<16x32xf32> to vector<16xf32>
    %4 = vector.shape_cast %3 : vector<16xf32> to vector<16x1xf32>
    %cst_5 = arith.constant 3.200000e+01 : f32
    %5 = vector.broadcast %cst_5 : f32 to vector<16x1xf32>
    %6 = arith.divf %4, %5 : vector<16x1xf32>
    %7 = vector.broadcast %6 : vector<16x1xf32> to vector<16x32xf32>
    %8 = arith.subf %0, %7 : vector<16x32xf32>
    %9 = arith.mulf %8, %8 : vector<16x32xf32>
    %cst_6 = arith.constant dense<0.000000e+00> : vector<16xf32>
    %10 = vector.multi_reduction <add>, %9, %cst_6 [1] : vector<16x32xf32> to vector<16xf32>
    %11 = vector.shape_cast %10 : vector<16xf32> to vector<16x1xf32>
    %cst_7 = arith.constant 3.200000e+01 : f32
    %12 = vector.broadcast %cst_7 : f32 to vector<16x1xf32>
    %13 = arith.divf %11, %12 : vector<16x1xf32>
    %cst_8 = arith.constant 9.99999974E-6 : f32
    %14 = vector.broadcast %cst_8 : f32 to vector<16x1xf32>
    %15 = arith.addf %13, %14 : vector<16x1xf32>
    %16 = math.rsqrt %15 : vector<16x1xf32>
    %17 = vector.broadcast %16 : vector<16x1xf32> to vector<16x32xf32>
    %18 = arith.mulf %8, %17 : vector<16x32xf32>
    %19 = vector.broadcast %1 : vector<1x32xf32> to vector<16x32xf32>
    %20 = arith.mulf %18, %19 : vector<16x32xf32>
    %21 = vector.broadcast %2 : vector<1x32xf32> to vector<16x32xf32>
    %22 = arith.addf %20, %21 : vector<16x32xf32>
    %23 = arith.truncf %22 : vector<16x32xf32> to vector<16x32xbf16>
    %c0_9 = arith.constant 0 : index
    %c0_10 = arith.constant 0 : index
    %24 = vector.load %arg5[%c0_9, %c0_10] : memref<32x16xbf16, #tpu.memory_space<vmem>>, vector<32x16xbf16>
    %cst_11 = arith.constant dense<0.000000e+00> : vector<16x16xf32>
    %25 = tpu.matmul %23, %24, %cst_11 {dimension_numbers = #tpu.dot_dimension_numbers<[1], [0], [0], [1], [0, 0, 1, 1], [], []>} : vector<16x32xbf16>, vector<32x16xbf16>, vector<16x16xf32> -> vector<16x16xf32>
    %c0_12 = arith.constant 0 : index
    %c0_13 = arith.constant 0 : index
    %26 = vector.load %arg6[%c0_12, %c0_13] : memref<1x16xf32, #tpu.memory_space<vmem>>, vector<1x16xf32>
    %27 = vector.broadcast %26 : vector<1x16xf32> to vector<16x16xf32>
    %28 = arith.addf %25, %27 : vector<16x16xf32>
    %c0_14 = arith.constant 0 : index
    %c0_15 = arith.constant 0 : index
    %29 = vector.load %arg2[%c0_14, %c0_15] : memref<16x1xf32, #tpu.memory_space<vmem>>, vector<16x1xf32>
    %30 = vector.broadcast %29 : vector<16x1xf32> to vector<16x16xf32>
    %31 = arith.mulf %28, %30 : vector<16x16xf32>
    %c0_16 = arith.constant 0 : index
    %c0_17 = arith.constant 0 : index
    %32 = vector.load %arg7[%c0_16, %c0_17] : memref<16x16xf32, #tpu.memory_space<vmem>>, vector<16x16xf32>
    tpu.vector_store %arg7[%c0_16, %c0_17], %31 {strides = array<i32>} : memref<16x16xf32, #tpu.memory_space<vmem>>, vector<16x16xf32>,
    return
  }
  func.func @transform_0(%arg0: i32) -> (i32, i32) {
    %c0_i32 = arith.constant 0 : i32
    %c0_i32_0 = arith.constant 0 : i32
    return %arg0, %c0_i32 : i32, i32
  }
  func.func @transform_1(%arg0: i32) -> (i32, i32) {
    %c0_i32 = arith.constant 0 : i32
    %c0_i32_0 = arith.constant 0 : i32
    return %arg0, %c0_i32 : i32, i32
  }
  func.func @transform_2(%arg0: i32) -> (i32, i32) {
    %c0_i32 = arith.constant 0 : i32
    %c0_i32_0 = arith.constant 0 : i32
    %c0_i32_1 = arith.constant 0 : i32
    return %c0_i32, %c0_i32_0 : i32, i32
  }
  func.func @transform_3(%arg0: i32) -> (i32, i32) {
    %c0_i32 = arith.constant 0 : i32
    %c0_i32_0 = arith.constant 0 : i32
    %c0_i32_1 = arith.constant 0 : i32
    return %c0_i32, %c0_i32_0 : i32, i32
  }
  func.func @transform_4(%arg0: i32) -> (i32, i32) {
    %c0_i32 = arith.constant 0 : i32
    %c0_i32_0 = arith.constant 0 : i32
    %c0_i32_1 = arith.constant 0 : i32
    return %c0_i32, %c0_i32_0 : i32, i32
  }
  func.func @transform_5(%arg0: i32) -> (i32, i32) {
    %c0_i32 = arith.constant 0 : i32
    %c0_i32_0 = arith.constant 0 : i32
    %c0_i32_1 = arith.constant 0 : i32
    return %c0_i32, %c0_i32_0 : i32, i32
  }
  func.func @transform_6(%arg0: i32) -> (i32, i32) {
    %c0_i32 = arith.constant 0 : i32
    %c0_i32_0 = arith.constant 0 : i32
    return %arg0, %c0_i32 : i32, i32
  }
}

</mosaic_0001>

<llo_original>
// kernel: tpu_custom_call.1
$region0: #{tpu_custom_call.1}
  #allocation0 [shape = 'u32[]', space=smem, size = 0x4, offset = 0x4, fixed_abs, tag = 'smem constant byte address 0x4 - core index']
  #allocation1 [shape = 'u32[144,128]{1,0:T(1,128)}', space=vmem, size = 0x12000, scoped, tag = 'internal scratch']
  %s0 = inlined_call_operand.vmem [shape: f32[16,32], index: 0, kind: input, shape index: {}]
  %s1 = inlined_call_operand.vmem [shape: f32[16,1], index: 1, kind: input, shape index: {}]
  %s2 = inlined_call_operand.vmem [shape: f32[1,32], index: 2, kind: input, shape index: {}]
  %s3 = inlined_call_operand.vmem [shape: f32[1,32], index: 3, kind: input, shape index: {}]
  %s4 = inlined_call_operand.vmem [shape: bf16[32,16], index: 4, kind: input, shape index: {}]
  %s5 = inlined_call_operand.vmem [shape: f32[1,16], index: 5, kind: input, shape index: {}]
  %s6 = inlined_call_operand.hbm [shape: f32[16,16], index: 6, kind: output, shape index: {}]
  %s7 = sld [smem:[#allocation0]]
  $region34: #{tpu_custom_call.1} parent=0
    _
  %s9 = ssub.s32 1, %s7
  %s10 = scalar_select 0, %s9, %s7
  $region1: #{tpu_custom_call.1} parent=0
    #allocation2 [shape = 'u8[8192]{0}', space=vmem, size = 0x2000, scoped, tag = 'output window, operand 0, single buffered']
    #allocation3 [shape = 's32[1]{0}', space=sflag, size = 0x4, scoped, tag = 'scoped memory for tpu_custom_call.1']
    %11 = vsyncpa [#allocation3], 0
    // Predicated region
    $region2: #{tpu_custom_call.1} parent=1 // pred_check
      _
    $region3: #{tpu_custom_call.1} parent=1 // pred_check_branch
      %13 = sbr.rel (0) target = $region5
    $region4: #{tpu_custom_call.1} parent=1 // pred_region
      _
    $region5: #{tpu_custom_call.1} parent=1 // pred_fallthru
      _
    // Predicated region
    $region6: #{tpu_custom_call.1} parent=1 // pred_check
      _
    $region7: #{tpu_custom_call.1} parent=1 // pred_check_branch
      %15 = sbr.rel (0) target = $region9
    $region8: #{tpu_custom_call.1} parent=1 // pred_region
      _
    $region9: #{tpu_custom_call.1} parent=1 // pred_fallthru
      _
    // Predicated region
    $region10: #{tpu_custom_call.1} parent=1 // pred_check
      _
    $region11: #{tpu_custom_call.1} parent=1 // pred_check_branch
      %17 = sbr.rel (0) target = $region13
    $region12: #{tpu_custom_call.1} parent=1 // pred_region
      _
    $region13: #{tpu_custom_call.1} parent=1 // pred_fallthru
      _
    // Predicated region
    $region14: #{tpu_custom_call.1} parent=1 // pred_check
      _
    $region15: #{tpu_custom_call.1} parent=1 // pred_check_branch
      %19 = sbr.rel (0) target = $region17
    $region16: #{tpu_custom_call.1} parent=1 // pred_region
      _
    $region17: #{tpu_custom_call.1} parent=1 // pred_fallthru
      _
    // Predicated region
    $region18: #{tpu_custom_call.1} parent=1 // pred_check
      _
    $region19: #{tpu_custom_call.1} parent=1 // pred_check_branch
      %21 = sbr.rel (0) target = $region21
    $region20: #{tpu_custom_call.1} parent=1 // pred_region
      _
    $region21: #{tpu_custom_call.1} parent=1 // pred_fallthru
      _
    // Predicated region
    $region22: #{tpu_custom_call.1} parent=1 // pred_check
      _
    $region23: #{tpu_custom_call.1} parent=1 // pred_check_branch
      %23 = sbr.rel (0) target = $region25
    $region24: #{tpu_custom_call.1} parent=1 // pred_region
      _
    $region25: #{tpu_custom_call.1} parent=1 // pred_fallthru
      _
    %v25 = vld [vmem:[%s0] sm:$0xff]
    %v26 = vld [vmem:[%s0 + $0x8] sm:$0xff]
    %v27 = vld [vmem:[%s2] sm:$0x1]
    %v28 = vld [vmem:[%s3] sm:$0x1]
    %vm29 = vcmask 261120
    %v30 = vsel %vm29, %v25, 0.0
    %31 = vadd.xlane.f32.xlu0 %v30
    %v32 = vpop.xlane.xlu0 %31
    %v33 = vsel %vm29, %v26, 0.0
    %34 = vadd.xlane.f32.xlu0 %v33
    %v35 = vpop.xlane.xlu0 %34
    %v36 = vrcp.pop 32.0
    %v37 = vmul.f32 %v32, %v36
    %v38 = vmul.f32 %v35, %v36
    %v39 = vsub.f32 %v25, %v37
    %v40 = vsub.f32 %v26, %v38
    %v41 = vmul.f32 %v39, %v39
    %v42 = vmul.f32 %v40, %v40
    %v43 = vsel %vm29, %v41, 0.0
    %44 = vadd.xlane.f32.xlu0 %v43
    %v45 = vpop.xlane.xlu0 %44
    %v46 = vsel %vm29, %v42, 0.0
    %47 = vadd.xlane.f32.xlu0 %v46
    %v48 = vpop.xlane.xlu0 %47
    %v49 = vmul.f32 %v45, %v36
    %v50 = vmul.f32 %v48, %v36
    %v51 = vadd.f32 %v49, 1e-05
    %v52 = vadd.f32 %v50, 1e-05
    %v53 = vrsqrt.pop %v51
    %v54 = vrsqrt.pop %v52
    %v55 = vmul.f32 %v39, %v53
    %v56 = vmul.f32 %v40, %v54
    %v58 = vlaneseq
    %v59 = vshrl.u32 %v58, 7
    %v60 = vsub.s32 0, %v59
    %v61 = vrot.slane %v27, %v60
    %v63 = vmul.f32 %v55, %v61
    %v64 = vmul.f32 %v56, %v61
    %v66 = vlaneseq
    %v67 = vshrl.u32 %v66, 7
    %v68 = vsub.s32 0, %v67
    %v69 = vrot.slane %v28, %v68
    %v71 = vadd.f32 %v63, %v69
    %v72 = vadd.f32 %v64, %v69
    %v73 = vpack.c.bf16 %v72, %v71
    %v74 = vld [vmem:[%s4] sm:$0xf]
    %v75 = vld [vmem:[%s4 + $0x4] sm:$0xf]
    %v76 = vld [vmem:[%s4 + $0x8] sm:$0xf]
    %v77 = vld [vmem:[%s4 + $0xc] sm:$0xf]
    %v78 = vld [vmem:[%s5] sm:$0x1]
    %v80 = vlaneseq
    %v81 = vshrl.u32 %v80, 7
    %v82 = vsub.s32 0, %v81
    %v83 = vrot.slane %v78, %v82
    %v89 = vunpack.c.l.b16 %v74
    %v90 = vunpack.c.l.b16 %v75
    %v91 = vunpack.c.l.b16 %v76
    %v92 = vunpack.c.l.b16 %v77
    %v93 = vpack.c.b16 %v90, %v89
    %v94 = vpack.c.b16 %v92, %v91
    %v98 = vsel %vm29, %v73, 0
    %100 = vmatprep.subr.bf16.mxu0 0
    %101 = vmatpush1.bf16.msra.mxu0 0
    %102 = vmatprep.subr.bf16.mxu0 0
    %103 = vmatpush1.bf16.msra.mxu0 0
    %104 = vmatprep.subr.bf16.mxu0 0
    %105 = vmatpush1.bf16.msra.mxu0 0
    %106 = vmatprep.subr.bf16.mxu0 0
    %107 = vmatpush1.bf16.msra.mxu0 0
    %108 = vmatprep.subr.bf16.mxu0 0
    %109 = vmatpush1.bf16.msra.mxu0 0
    %110 = vmatprep.subr.bf16.mxu0 0
    %111 = vmatpush1.bf16.msra.mxu0 0
    %112 = vmatprep.subr.bf16.mxu0 0
    %113 = vmatpush1.bf16.msra.mxu0 %v94
    %114 = vmatprep.subr.bf16.mxu0 0
    %115 = vmatpush1.bf16.msra.mxu0 %v93
    %116 = vmatprep.subr.bf16.mxu0 0
    %117 = vmatpush2.bf16.msra.mxu0 0
    %118 = vmatprep.subr.bf16.mxu0 0
    %119 = vmatpush2.bf16.msra.mxu0 0
    %120 = vmatprep.subr.bf16.mxu0 0
    %121 = vmatpush2.bf16.msra.mxu0 0
    %122 = vmatprep.subr.bf16.mxu0 0
    %123 = vmatpush2.bf16.msra.mxu0 0
    %124 = vmatprep.subr.bf16.mxu0 0
    %125 = vmatpush2.bf16.msra.mxu0 0
    %126 = vmatprep.subr.bf16.mxu0 0
    %127 = vmatpush2.bf16.msra.mxu0 0
    %128 = vmatprep.subr.bf16.mxu0 0
    %129 = vmatpush2.bf16.msra.mxu0 0
    %130 = vmatprep.subr.bf16.mxu0 0
    %131 = vmatpush2.bf16.msra.mxu0 0
    %132 = vmatprep.mubr.bf16.mxu0 0
    %133 = vmatmul.mubr.bf16.gmra.mxu0 %v98
    %v134 = vpop.f32.mrf.mxu0
    %v135 = vadd.f32 %v83, %v134
    %v136 = vpop.f32.mrf.mxu0
    %v137 = vpop.f32.mrf.mxu0
    %v138 = vadd.f32 %v83, %v137
    %v139 = vpop.f32.mrf.mxu0
    %140 = vdwg.mxu0
    %v141 = vld [vmem:[%s1] sm:$0xff]
    %v142 = vld [vmem:[%s1 + $0x8] sm:$0xff]
    %144 = vset.pattern.permute.xlu0 0
    %145 = vperm.xlu0 %144, %v141
    %v146 = vpop.permute.xlu0 %145
    %149 = vset.pattern.permute.xlu0 0
    %150 = vperm.xlu0 %149, %v142
    %v151 = vpop.permute.xlu0 %150
    %v153 = vmul.f32 %v135, %v146
    %v154 = vmul.f32 %v138, %v151
    %vm155 = vcmask 130048
    %156 = vst.msk [vmem:[#allocation2] sm:$0xff] %vm155, %v153
    %157 = vst.msk [vmem:[#allocation2 + $0x8] sm:$0xff] %vm155, %v154
    // Predicated region
    $region26: #{tpu_custom_call.1} parent=1 // pred_check
      _
    $region27: #{tpu_custom_call.1} parent=1 // pred_check_branch
      %159 = sbr.rel (0) target = $region29
    $region28: #{tpu_custom_call.1} parent=1 // pred_region
      %s161 = ssub.s32 256, 256
      %162 = vsyncadd [#allocation3], %s161
      %s163 = sshll.u32 [#allocation2], 4
      %s164 = int_to_ptr.vmem [resolvable:$true] %s163
      %169 = dma.vmem_to_hbm [thread:$0]  %s164, 256, %s6, [#allocation3], 128, 128, 8
    $region29: #{tpu_custom_call.1} parent=1 // pred_fallthru
      _
    // Predicated region
    $region30: #{tpu_custom_call.1} parent=1 // pred_check
      _
    $region31: #{tpu_custom_call.1} parent=1 // pred_check_branch
      %171 = sbr.rel (0) target = $region33
    $region32: #{tpu_custom_call.1} parent=1 // pred_region
      %172 = dma.done [#allocation3], 256
    $region33: #{tpu_custom_call.1} parent=1 // pred_fallthru
      _
    %173 = vsyncpa [#allocation3], 1

</llo_original>
